<compile_context>
chip_gen: v5e
topology: v5e:2x2
jax: 0.10.0
libtpu: 0.0.40
codegen_flags: <defaults>
</compile_context>

<pallas_src>
import math

import jax
import jax.numpy as jnp
from jax.experimental import pallas as pl
from jax.experimental.pallas import tpu as pltpu

HIDDEN = 64             # rnn_hidden_dim; actor input is concat(x, action) -> 128
ACTOR_IN = 2 * HIDDEN   # 128
STATE_DIM = 64          # state_dim fed to the critic (== encoded state width)

# ---- packed-parameter layout: one [P_ROWS, 128] f32 buffer, 8-aligned row offsets,
# ---- everything narrower than 128 lanes is zero-padded so no column slicing is needed.
OFF_W1X = 0      # [64, 128]   actor W1 rows acting on x
OFF_W1A = 64     # [64, 128]   actor W1 rows acting on action
OFF_B1 = 128     # [1, 128]
OFF_W2 = 136     # [128, 128]  (cols 64: zero)
OFF_B2 = 264     # [1, 128]    (cols 64: zero)
OFF_W3 = 272     # [1, 128]    actor 64->1 weights as a row (cols 64: zero)
OFF_CW1 = 280    # [64, 128]   critic W1 (cols 64: zero)
OFF_CW2 = 344    # [128, 128]  critic W2 (rows/cols 64: zero)
OFF_CB1 = 472    # [1, 128]
OFF_CB2 = 480    # [1, 128]
OFF_CW3 = 488    # [1, 128]    critic 64->1 weights as a row
P_ROWS = 496


# ----------------------------- Pallas kernel ------------------------------


def actor_critic_kernel(scalars_ref, params_ref, x_ref, a_ref,
                        probs_ref, logits_ref, value_ref):
    """One grid step == one env: K-candidate policy + critic value."""
    x = x_ref[...]            # [1, HIDDEN]   env representation
    a = a_ref[0]              # [K, HIDDEN]   candidate action states

    # ---------------- actor: concat(x, a) folded into the first matmul ----------------
    w1x = params_ref[OFF_W1X:OFF_W1X + HIDDEN, :]        # [64, 128]
    w1a = params_ref[OFF_W1A:OFF_W1A + HIDDEN, :]        # [64, 128]
    b1 = params_ref[OFF_B1, :]                           # [128]
    # x-contribution computed once ([1,128]) and broadcast over the K candidates.
    xh = jnp.dot(x, w1x, preferred_element_type=jnp.float32)            # [1, 128]
    h1 = jnp.dot(a, w1a, preferred_element_type=jnp.float32) + xh + b1  # [K, 128]
    h1 = jnp.maximum(h1, 0.0)

    w2 = params_ref[OFF_W2:OFF_W2 + 128, :]              # [128, 128] zero-padded
    b2 = params_ref[OFF_B2, :]                           # [128]      zero-padded
    h2 = jnp.maximum(jnp.dot(h1, w2, preferred_element_type=jnp.float32) + b2, 0.0)

    w3 = params_ref[OFF_W3:OFF_W3 + 1, :]                # [1, 128]   zero-padded row
    b3 = scalars_ref[0]
    # contract over the feature axis of both operands -> lane-dense [1, K] logits
    logits = jax.lax.dot_general(
        w3, h2, dimension_numbers=(((1,), (1,)), ((), ())),
        preferred_element_type=jnp.float32) + b3         # [1, K]
    logits_ref[...] = logits

    # softmax over the K candidate actions (lane axis)
    m = jnp.max(logits, axis=-1, keepdims=True)
    e = jnp.exp(logits - m)
    denom = jnp.sum(e, axis=-1, keepdims=True)
    probs_ref[...] = e * pl.reciprocal(denom, approx=True)

    # ---------------- critic: state_dim -> 64 -> 64 -> 1 (Tanh hidden) ----------------
    cw1 = params_ref[OFF_CW1:OFF_CW1 + STATE_DIM, :]     # [64, 128]  zero-padded
    cb1 = params_ref[OFF_CB1, :]
    cw2 = params_ref[OFF_CW2:OFF_CW2 + 128, :]           # [128, 128] zero-padded
    cb2 = params_ref[OFF_CB2, :]
    cw3 = params_ref[OFF_CW3, :]                         # [128]      zero-padded row
    cb3 = scalars_ref[1]

    hc1 = jnp.tanh(jnp.dot(x, cw1, preferred_element_type=jnp.float32) + cb1)    # [1,128]
    hc2 = jnp.tanh(jnp.dot(hc1, cw2, preferred_element_type=jnp.float32) + cb2)  # [1,128]
    # 64 -> 1 output layer on the VPU (elementwise mul + lane reduce), not the MXU.
    value_ref[...] = jnp.sum(hc2 * cw3, axis=-1, keepdims=True) + cb3             # [1,1]


# --------------------------- pallas_call wrapper ---------------------------


@jax.jit
def actor_critic_forward(scalars, params, encoded_state, action_states):
    n, k, _ = action_states.shape
    return pl.pallas_call(
        actor_critic_kernel,
        grid=(n,),
        in_specs=[
            pl.BlockSpec(memory_space=pltpu.MemorySpace.SMEM),       # [2] output biases
            pl.BlockSpec((P_ROWS, 128), lambda i: (0, 0)),           # packed weights (resident)
            pl.BlockSpec((1, HIDDEN), lambda i: (i, 0)),             # encoded_state[i]
            pl.BlockSpec((1, k, HIDDEN), lambda i: (i, 0, 0)),       # action_states[i]
        ],
        out_specs=(
            pl.BlockSpec((1, k), lambda i: (i, 0)),                  # probs
            pl.BlockSpec((1, k), lambda i: (i, 0)),                  # logits
            pl.BlockSpec((1, 1), lambda i: (i, 0)),                  # value
        ),
        out_shape=(
            jax.ShapeDtypeStruct((n, k), jnp.float32),
            jax.ShapeDtypeStruct((n, k), jnp.float32),
            jax.ShapeDtypeStruct((n, 1), jnp.float32),
        ),
        compiler_params=pltpu.CompilerParams(dimension_semantics=("parallel",)),
    )(scalars, params, encoded_state, action_states)


# ------------------------------ parameter setup -----------------------------


def _linear_params(key, fan_in, fan_out):
    """PyTorch nn.Linear default init: U(-1/sqrt(fan_in), 1/sqrt(fan_in))."""
    kw, kb = jax.random.split(key)
    bound = 1.0 / math.sqrt(fan_in)
    w = jax.random.uniform(kw, (fan_in, fan_out), jnp.float32, -bound, bound)
    b = jax.random.uniform(kb, (fan_out,), jnp.float32, -bound, bound)
    return w, b


def _pack_params(a_w1, a_b1, a_w2, a_b2, a_w3, c_w1, c_b1, c_w2, c_b2, c_w3):
    p = jnp.zeros((P_ROWS, 128), jnp.float32)
    p = p.at[OFF_W1X:OFF_W1X + HIDDEN, :].set(a_w1[:HIDDEN])
    p = p.at[OFF_W1A:OFF_W1A + HIDDEN, :].set(a_w1[HIDDEN:])
    p = p.at[OFF_B1, :].set(a_b1)
    p = p.at[OFF_W2:OFF_W2 + 128, :64].set(a_w2)
    p = p.at[OFF_B2, :64].set(a_b2)
    p = p.at[OFF_W3, :64].set(a_w3[:, 0])
    p = p.at[OFF_CW1:OFF_CW1 + STATE_DIM, :64].set(c_w1)
    p = p.at[OFF_CW2:OFF_CW2 + 64, :64].set(c_w2)
    p = p.at[OFF_CB1, :64].set(c_b1)
    p = p.at[OFF_CB2, :64].set(c_b2)
    p = p.at[OFF_CW3, :64].set(c_w3[:, 0])
    return p


class ActorCriticPallas:
    def __init__(self, state_dim, key):
        keys = jax.random.split(key, 6)
        # Actor.mlp_policy: 128 -> 128 -> 64 -> 1 (ReLU hidden, Identity output)
        self.a_w1, self.a_b1 = _linear_params(keys[0], ACTOR_IN, 128)
        self.a_w2, self.a_b2 = _linear_params(keys[1], 128, 64)
        self.a_w3, self.a_b3 = _linear_params(keys[2], 64, 1)
        # Critic: state_dim -> 64 -> 64 -> 1 (Tanh hidden, Identity output)
        self.c_w1, self.c_b1 = _linear_params(keys[3], state_dim, 64)
        self.c_w2, self.c_b2 = _linear_params(keys[4], 64, 64)
        self.c_w3, self.c_b3 = _linear_params(keys[5], 64, 1)

        self.params = _pack_params(self.a_w1, self.a_b1, self.a_w2, self.a_b2,
                                   self.a_w3, self.c_w1, self.c_b1,
                                   self.c_w2, self.c_b2, self.c_w3)
        self.scalars = jnp.array([self.a_b3[0], self.c_b3[0]], dtype=jnp.float32)

    def forward(self, encoded_state, action_states):
        """encoded_state: [N, HIDDEN]; action_states: [N, K, HIDDEN]
        -> (probs [N, K], logits [N, K], value [N, 1]) — fused single kernel."""
        return actor_critic_forward(self.scalars, self.params,
                                    encoded_state, action_states)

    def reference(self, encoded_state, action_states):
        """Pure-JAX f32 reference of the same forward pass (for parity checks)."""
        n, k, _ = action_states.shape
        x = jnp.broadcast_to(encoded_state[:, None, :], (n, k, HIDDEN))
        inp = jnp.concatenate([x, action_states], axis=-1).reshape(n * k, ACTOR_IN)
        h1 = jnp.maximum(inp @ self.a_w1 + self.a_b1, 0.0)
        h2 = jnp.maximum(h1 @ self.a_w2 + self.a_b2, 0.0)
        logits = (h2 @ self.a_w3 + self.a_b3).reshape(n, k)
        probs = jax.nn.softmax(logits, axis=-1)
        v1 = jnp.tanh(encoded_state @ self.c_w1 + self.c_b1)
        v2 = jnp.tanh(v1 @ self.c_w2 + self.c_b2)
        value = v2 @ self.c_w3 + self.c_b3
        return probs, logits, value


# ----------------------------------- main -----------------------------------


if __name__ == "__main__":
    key = jax.random.PRNGKey(0)
    k_params, k_enc, k_act = jax.random.split(key, 3)

    model = ActorCriticPallas(STATE_DIM, k_params)

    # act()-style single-env call: 1 env, K = 8 candidate actions
    # (stand-ins for RepresentationNetwork output / action_mapping_list values).
    N, K = 1, 8
    encoded_state = jax.random.normal(k_enc, (N, HIDDEN), dtype=jnp.float32)
    action_states = jax.random.normal(k_act, (N, K, HIDDEN), dtype=jnp.float32)

    probs, logits, value = model.forward(encoded_state, action_states)
    jax.block_until_ready((probs, logits, value))

    # parity against the pure-JAX f32 reference
    ref_probs, ref_logits, ref_value = model.reference(encoded_state, action_states)
    assert probs.shape == (N, K) and logits.shape == (N, K) and value.shape == (N, 1)
    assert float(jnp.max(jnp.abs(logits - ref_logits))) < 1e-4
    assert float(jnp.max(jnp.abs(value - ref_value))) < 1e-3
    assert float(jnp.max(jnp.abs(probs - ref_probs))) < 1e-2   # approx reciprocal
    assert abs(float(jnp.sum(probs[0])) - 1.0) < 1e-2
    assert bool(jnp.all(jnp.isfinite(probs))) and bool(jnp.all(jnp.isfinite(value)))

    # act()-style glue (deterministic): greedy action + its log-prob.
    best = int(jnp.argmax(probs[0]))
    action_logprob = float(jnp.log(probs[0, best]))
    assert jnp.isfinite(action_logprob)

    print("KERNEL_OK")
</pallas_src>

<mosaic_0001>
module attributes {stable_mosaic.version = 11 : i64} {
  func.func @actor_critic_kernel(%arg0: i32, %arg1: memref<2xf32, #tpu.memory_space<smem>>, %arg2: memref<496x128xf32, #tpu.memory_space<vmem>>, %arg3: memref<1x64xf32, #tpu.memory_space<vmem>>, %arg4: memref<1x8x64xf32, #tpu.memory_space<vmem>>, %arg5: memref<1x8xf32, #tpu.memory_space<vmem>>, %arg6: memref<1x8xf32, #tpu.memory_space<vmem>>, %arg7: memref<1x1xf32, #tpu.memory_space<vmem>>) attributes {dimension_semantics = [#tpu.dimension_semantics<parallel>], iteration_bounds = array<i64: 1>, scalar_prefetch = 0 : i64, scratch_operands = 0 : i64, tpu.core_type = #tpu.core_type<tc>, window_params = [{transform_indices = @transform_0, window_bounds = array<i64: 2>}, {pipeline_mode = #tpu.pipeline_mode<synchronous>, transform_indices = @transform_1, window_bounds = array<i64: 496, 128>}, {transform_indices = @transform_2, window_bounds = array<i64: 1, 64>}, {transform_indices = @transform_3, window_bounds = array<i64: 1, 8, 64>}, {transform_indices = @transform_4, window_bounds = array<i64: 1, 8>}, {transform_indices = @transform_5, window_bounds = array<i64: 1, 8>}, {transform_indices = @transform_6, window_bounds = array<i64: 1, 1>}]} {
    %c0 = arith.constant 0 : index
    %c0_0 = arith.constant 0 : index
    %0 = vector.load %arg3[%c0, %c0_0] : memref<1x64xf32, #tpu.memory_space<vmem>>, vector<1x64xf32>
    %c0_1 = arith.constant 0 : index
    %c0_2 = arith.constant 0 : index
    %c0_3 = arith.constant 0 : index
    %1 = vector.load %arg4[%c0_1, %c0_2, %c0_3] : memref<1x8x64xf32, #tpu.memory_space<vmem>>, vector<1x8x64xf32>
    %2 = vector.shape_cast %1 : vector<1x8x64xf32> to vector<8x64xf32>
    %c0_4 = arith.constant 0 : index
    %c0_5 = arith.constant 0 : index
    %3 = vector.load %arg2[%c0_4, %c0_5] : memref<496x128xf32, #tpu.memory_space<vmem>>, vector<64x128xf32>
    %c64 = arith.constant 64 : index
    %c0_6 = arith.constant 0 : index
    %4 = vector.load %arg2[%c64, %c0_6] : memref<496x128xf32, #tpu.memory_space<vmem>>, vector<64x128xf32>
    %c128 = arith.constant 128 : index
    %c0_7 = arith.constant 0 : index
    %5 = vector.load %arg2[%c128, %c0_7] : memref<496x128xf32, #tpu.memory_space<vmem>>, vector<1x128xf32>
    %6 = vector.shape_cast %5 : vector<1x128xf32> to vector<128xf32>
    %cst = arith.constant dense<0.000000e+00> : vector<1x128xf32>
    %7 = tpu.matmul %0, %3, %cst {dimension_numbers = #tpu.dot_dimension_numbers<[1], [0], [0], [1], [0, 0, 1, 1], [], []>} : vector<1x64xf32>, vector<64x128xf32>, vector<1x128xf32> -> vector<1x128xf32>
    %cst_8 = arith.constant dense<0.000000e+00> : vector<8x128xf32>
    %8 = tpu.matmul %2, %4, %cst_8 {dimension_numbers = #tpu.dot_dimension_numbers<[1], [0], [0], [1], [0, 0, 1, 1], [], []>} : vector<8x64xf32>, vector<64x128xf32>, vector<8x128xf32> -> vector<8x128xf32>
    %9 = vector.broadcast %7 : vector<1x128xf32> to vector<8x128xf32>
    %10 = arith.addf %8, %9 : vector<8x128xf32>
    %11 = vector.shape_cast %6 : vector<128xf32> to vector<1x128xf32>
    %12 = vector.broadcast %11 : vector<1x128xf32> to vector<8x128xf32>
    %13 = arith.addf %10, %12 : vector<8x128xf32>
    %cst_9 = arith.constant 0.000000e+00 : f32
    %14 = vector.broadcast %cst_9 : f32 to vector<8x128xf32>
    %15 = arith.maximumf %13, %14 : vector<8x128xf32>
    %c136 = arith.constant 136 : index
    %c0_10 = arith.constant 0 : index
    %16 = vector.load %arg2[%c136, %c0_10] : memref<496x128xf32, #tpu.memory_space<vmem>>, vector<128x128xf32>
    %c264 = arith.constant 264 : index
    %c0_11 = arith.constant 0 : index
    %17 = vector.load %arg2[%c264, %c0_11] : memref<496x128xf32, #tpu.memory_space<vmem>>, vector<1x128xf32>
    %18 = vector.shape_cast %17 : vector<1x128xf32> to vector<128xf32>
    %cst_12 = arith.constant dense<0.000000e+00> : vector<8x128xf32>
    %19 = tpu.matmul %15, %16, %cst_12 {dimension_numbers = #tpu.dot_dimension_numbers<[1], [0], [0], [1], [0, 0, 1, 1], [], []>} : vector<8x128xf32>, vector<128x128xf32>, vector<8x128xf32> -> vector<8x128xf32>
    %20 = vector.shape_cast %18 : vector<128xf32> to vector<1x128xf32>
    %21 = vector.broadcast %20 : vector<1x128xf32> to vector<8x128xf32>
    %22 = arith.addf %19, %21 : vector<8x128xf32>
    %cst_13 = arith.constant 0.000000e+00 : f32
    %23 = vector.broadcast %cst_13 : f32 to vector<8x128xf32>
    %24 = arith.maximumf %22, %23 : vector<8x128xf32>
    %c272 = arith.constant 272 : index
    %c0_14 = arith.constant 0 : index
    %25 = vector.load %arg2[%c272, %c0_14] : memref<496x128xf32, #tpu.memory_space<vmem>>, vector<1x128xf32>
    %c0_15 = arith.constant 0 : index
    %26 = memref.load %arg1[%c0_15] : memref<2xf32, #tpu.memory_space<smem>>
    %cst_16 = arith.constant dense<0.000000e+00> : vector<1x8xf32>
    %27 = tpu.matmul %25, %24, %cst_16 {dimension_numbers = #tpu.dot_dimension_numbers<[1], [1], [0], [0], [0, 0, 1, 0], [], []>} : vector<1x128xf32>, vector<8x128xf32>, vector<1x8xf32> -> vector<1x8xf32>
    %28 = vector.broadcast %26 : f32 to vector<1x8xf32>
    %29 = arith.addf %27, %28 : vector<1x8xf32>
    %c0_17 = arith.constant 0 : index
    %c0_18 = arith.constant 0 : index
    %30 = vector.load %arg6[%c0_17, %c0_18] : memref<1x8xf32, #tpu.memory_space<vmem>>, vector<1x8xf32>
    tpu.vector_store %arg6[%c0_17, %c0_18], %29 {strides = array<i32>} : memref<1x8xf32, #tpu.memory_space<vmem>>, vector<1x8xf32>,
    %cst_19 = arith.constant dense<0xFF800000> : vector<1xf32>
    %31 = vector.multi_reduction <maximumf>, %29, %cst_19 [1] : vector<1x8xf32> to vector<1xf32>
    %32 = vector.shape_cast %31 : vector<1xf32> to vector<1x1xf32>
    %33 = vector.broadcast %32 : vector<1x1xf32> to vector<1x8xf32>
    %34 = arith.subf %29, %33 : vector<1x8xf32>
    %35 = math.exp %34 : vector<1x8xf32>
    %cst_20 = arith.constant dense<0.000000e+00> : vector<1xf32>
    %36 = vector.multi_reduction <add>, %35, %cst_20 [1] : vector<1x8xf32> to vector<1xf32>
    %37 = vector.shape_cast %36 : vector<1xf32> to vector<1x1xf32>
    %38 = tpu.reciprocal %37 {approx = true} : vector<1x1xf32> -> vector<1x1xf32>
    %39 = vector.broadcast %38 : vector<1x1xf32> to vector<1x8xf32>
    %40 = arith.mulf %35, %39 : vector<1x8xf32>
    %c0_21 = arith.constant 0 : index
    %c0_22 = arith.constant 0 : index
    %41 = vector.load %arg5[%c0_21, %c0_22] : memref<1x8xf32, #tpu.memory_space<vmem>>, vector<1x8xf32>
    tpu.vector_store %arg5[%c0_21, %c0_22], %40 {strides = array<i32>} : memref<1x8xf32, #tpu.memory_space<vmem>>, vector<1x8xf32>,
    %c280 = arith.constant 280 : index
    %c0_23 = arith.constant 0 : index
    %42 = vector.load %arg2[%c280, %c0_23] : memref<496x128xf32, #tpu.memory_space<vmem>>, vector<64x128xf32>
    %c472 = arith.constant 472 : index
    %c0_24 = arith.constant 0 : index
    %43 = vector.load %arg2[%c472, %c0_24] : memref<496x128xf32, #tpu.memory_space<vmem>>, vector<1x128xf32>
    %44 = vector.shape_cast %43 : vector<1x128xf32> to vector<128xf32>
    %c344 = arith.constant 344 : index
    %c0_25 = arith.constant 0 : index
    %45 = vector.load %arg2[%c344, %c0_25] : memref<496x128xf32, #tpu.memory_space<vmem>>, vector<128x128xf32>
    %c480 = arith.constant 480 : index
    %c0_26 = arith.constant 0 : index
    %46 = vector.load %arg2[%c480, %c0_26] : memref<496x128xf32, #tpu.memory_space<vmem>>, vector<1x128xf32>
    %47 = vector.shape_cast %46 : vector<1x128xf32> to vector<128xf32>
    %c488 = arith.constant 488 : index
    %c0_27 = arith.constant 0 : index
    %48 = vector.load %arg2[%c488, %c0_27] : memref<496x128xf32, #tpu.memory_space<vmem>>, vector<1x128xf32>
    %49 = vector.shape_cast %48 : vector<1x128xf32> to vector<128xf32>
    %c1 = arith.constant 1 : index
    %50 = memref.load %arg1[%c1] : memref<2xf32, #tpu.memory_space<smem>>
    %cst_28 = arith.constant dense<0.000000e+00> : vector<1x128xf32>
    %51 = tpu.matmul %0, %42, %cst_28 {dimension_numbers = #tpu.dot_dimension_numbers<[1], [0], [0], [1], [0, 0, 1, 1], [], []>} : vector<1x64xf32>, vector<64x128xf32>, vector<1x128xf32> -> vector<1x128xf32>
    %52 = vector.shape_cast %44 : vector<128xf32> to vector<1x128xf32>
    %53 = arith.addf %51, %52 : vector<1x128xf32>
    %54 = math.tanh %53 : vector<1x128xf32>
    %cst_29 = arith.constant dense<0.000000e+00> : vector<1x128xf32>
    %55 = tpu.matmul %54, %45, %cst_29 {dimension_numbers = #tpu.dot_dimension_numbers<[1], [0], [0], [1], [0, 0, 1, 1], [], []>} : vector<1x128xf32>, vector<128x128xf32>, vector<1x128xf32> -> vector<1x128xf32>
    %56 = vector.shape_cast %47 : vector<128xf32> to vector<1x128xf32>
    %57 = arith.addf %55, %56 : vector<1x128xf32>
    %58 = math.tanh %57 : vector<1x128xf32>
    %59 = vector.shape_cast %49 : vector<128xf32> to vector<1x128xf32>
    %60 = arith.mulf %58, %59 : vector<1x128xf32>
    %cst_30 = arith.constant dense<0.000000e+00> : vector<1xf32>
    %61 = vector.multi_reduction <add>, %60, %cst_30 [1] : vector<1x128xf32> to vector<1xf32>
    %62 = vector.shape_cast %61 : vector<1xf32> to vector<1x1xf32>
    %63 = vector.broadcast %50 : f32 to vector<1x1xf32>
    %64 = arith.addf %62, %63 : vector<1x1xf32>
    %c0_31 = arith.constant 0 : index
    %c0_32 = arith.constant 0 : index
    %65 = vector.load %arg7[%c0_31, %c0_32] : memref<1x1xf32, #tpu.memory_space<vmem>>, vector<1x1xf32>
    tpu.vector_store %arg7[%c0_31, %c0_32], %64 {strides = array<i32>} : memref<1x1xf32, #tpu.memory_space<vmem>>, vector<1x1xf32>,
    return
  }
  func.func @transform_0(%arg0: i32) -> i32 {
    %c0_i32 = arith.constant 0 : i32
    %c0_i32_0 = arith.constant 0 : i32
    return %c0_i32 : i32
  }
  func.func @transform_1(%arg0: i32) -> (i32, i32) {
    %c0_i32 = arith.constant 0 : i32
    %c0_i32_0 = arith.constant 0 : i32
    %c0_i32_1 = arith.constant 0 : i32
    return %c0_i32, %c0_i32_0 : i32, i32
  }
  func.func @transform_2(%arg0: i32) -> (i32, i32) {
    %c0_i32 = arith.constant 0 : i32
    %c0_i32_0 = arith.constant 0 : i32
    return %arg0, %c0_i32 : i32, i32
  }
  func.func @transform_3(%arg0: i32) -> (i32, i32, i32) {
    %c0_i32 = arith.constant 0 : i32
    %c0_i32_0 = arith.constant 0 : i32
    %c0_i32_1 = arith.constant 0 : i32
    return %arg0, %c0_i32, %c0_i32_0 : i32, i32, i32
  }
  func.func @transform_4(%arg0: i32) -> (i32, i32) {
    %c0_i32 = arith.constant 0 : i32
    %c0_i32_0 = arith.constant 0 : i32
    return %arg0, %c0_i32 : i32, i32
  }
  func.func @transform_5(%arg0: i32) -> (i32, i32) {
    %c0_i32 = arith.constant 0 : i32
    %c0_i32_0 = arith.constant 0 : i32
    return %arg0, %c0_i32 : i32, i32
  }
  func.func @transform_6(%arg0: i32) -> (i32, i32) {
    %c0_i32 = arith.constant 0 : i32
    %c0_i32_0 = arith.constant 0 : i32
    return %arg0, %c0_i32 : i32, i32
  }
}

</mosaic_0001>

<llo_original>
// kernel: actor_critic_forward.1
$region0: #{actor_critic_forward.1}
  #allocation0 [shape = 'u32[]', space=smem, size = 0x4, offset = 0x4, fixed_abs, tag = 'smem constant byte address 0x4 - core index']
  #allocation1 [shape = 'u32[72,128]{1,0:T(1,128)}', space=vmem, size = 0x9000, scoped, tag = 'internal scratch']
  %s0 = inlined_call_operand.hbm [shape: f32[2], index: 0, kind: input, shape index: {}]
  %s1 = inlined_call_operand.hbm [shape: f32[496,128], index: 1, kind: input, shape index: {}]
  %s2 = inlined_call_operand.vmem [shape: f32[1,64], index: 2, kind: input, shape index: {}]
  %s3 = inlined_call_operand.hbm [shape: f32[1,8,64], index: 3, kind: input, shape index: {}]
  %s4 = inlined_call_operand.hbm [shape: f32[1,8], index: 4, kind: output, shape index: {0}]
  %s5 = inlined_call_operand.hbm [shape: f32[1,8], index: 5, kind: output, shape index: {1}]
  %s6 = inlined_call_operand.hbm [shape: f32[1,1], index: 6, kind: output, shape index: {2}]
  %7 = xla_tuple %s4, %s5, %s6
  %s8 = sld [smem:[#allocation0]]
  $region54: #{actor_critic_forward.1} parent=0
    _
  %s10 = ssub.s32 1, %s8
  %s11 = scalar_select 0, %s10, %s8
  $region1: #{actor_critic_forward.1} parent=0
    #allocation2 [shape = 'u8[512]{0}', space=smem, size = 0x200, scoped, tag = 'input window, operand 0, single buffered']
    #allocation3 [shape = 's32[1]{0}', space=sflag, size = 0x4, scoped, tag = 'scoped memory for actor_critic_forward.1']
    #allocation4 [shape = 's32[1]{0}', space=sflag, size = 0x4, scoped, tag = 'scoped memory for actor_critic_forward.1']
    #allocation5 [shape = 's32[1]{0}', space=sflag, size = 0x4, scoped, tag = 'scoped memory for actor_critic_forward.1']
    #allocation6 [shape = 'u8[253952]{0}', space=vmem, size = 0x3e000, scoped, tag = 'input window, operand 1, single buffered']
    #allocation7 [shape = 'u8[4096]{0}', space=vmem, size = 0x1000, scoped, tag = 'input window, operand 3, single buffered']
    #allocation8 [shape = 's32[1]{0}', space=sflag, size = 0x4, scoped, tag = 'scoped memory for actor_critic_forward.1']
    #allocation9 [shape = 'u8[512]{0}', space=vmem, size = 0x400, scoped, tag = 'output window, operand 0, single buffered']
    #allocation10 [shape = 'u8[512]{0}', space=vmem, size = 0x400, scoped, tag = 'output window, operand 1, single buffered']
    #allocation11 [shape = 's32[1]{0}', space=sflag, size = 0x4, scoped, tag = 'scoped memory for actor_critic_forward.1']
    #allocation12 [shape = 'u8[512]{0}', space=vmem, size = 0x400, scoped, tag = 'output window, operand 2, single buffered']
    %12 = vsyncpa [#allocation5], 0
    %13 = vsyncpa [#allocation3], 0
    %14 = vsyncpa [#allocation8], 0
    %15 = vsyncpa [#allocation4], 0
    %16 = vsyncpa [#allocation11], 0
    // Predicated region
    $region2: #{actor_critic_forward.1} parent=1 // pred_check
      _
    $region3: #{actor_critic_forward.1} parent=1 // pred_check_branch
      %18 = sbr.rel (0) target = $region5
    $region4: #{actor_critic_forward.1} parent=1 // pred_region
      %20 = vsyncadd [#allocation5], 0
      %s22 = sshll.u32 %s0, 4
      %s23 = int_to_ptr.hbm [resolvable:$true] %s22
      %25 = dma.hbm_to_smem %s23, 16, [#allocation2], [#allocation5]
    $region5: #{actor_critic_forward.1} parent=1 // pred_fallthru
      _
    // Predicated region
    $region6: #{actor_critic_forward.1} parent=1 // pred_check
      _
    $region7: #{actor_critic_forward.1} parent=1 // pred_check_branch
      %27 = sbr.rel (0) target = $region9
    $region8: #{actor_critic_forward.1} parent=1 // pred_region
      %29 = vsyncadd [#allocation3], 0
      %s30 = sshll.u32 %s1, 4
      %s31 = int_to_ptr.hbm [resolvable:$true] %s30
      %s32 = sshll.u32 [#allocation6], 4
      %s33 = int_to_ptr.vmem [resolvable:$true] %s32
      %38 = dma.hbm_to_vmem [thread:$0]  %s31, 7936, %s33, [#allocation3], 128, 128, 8
    $region9: #{actor_critic_forward.1} parent=1 // pred_fallthru
      _
    // Predicated region
    $region10: #{actor_critic_forward.1} parent=1 // pred_check
      _
    $region11: #{actor_critic_forward.1} parent=1 // pred_check_branch
      %40 = sbr.rel (0) target = $region13
    $region12: #{actor_critic_forward.1} parent=1 // pred_region
      _
    $region13: #{actor_critic_forward.1} parent=1 // pred_fallthru
      _
    // Predicated region
    $region14: #{actor_critic_forward.1} parent=1 // pred_check
      _
    $region15: #{actor_critic_forward.1} parent=1 // pred_check_branch
      %42 = sbr.rel (0) target = $region17
    $region16: #{actor_critic_forward.1} parent=1 // pred_region
      %44 = vsyncadd [#allocation8], 0
      %s46 = sshll.u32 %s3, 4
      %s47 = int_to_ptr.hbm [resolvable:$true] %s46
      %s48 = sshll.u32 [#allocation7], 4
      %s49 = int_to_ptr.vmem [resolvable:$true] %s48
      %51 = dma.hbm_to_vmem [thread:$0]  %s47, 128, %s49, [#allocation8]
    $region17: #{actor_critic_forward.1} parent=1 // pred_fallthru
      _
    // Predicated region
    $region18: #{actor_critic_forward.1} parent=1 // pred_check
      _
    $region19: #{actor_critic_forward.1} parent=1 // pred_check_branch
      %53 = sbr.rel (0) target = $region21
    $region20: #{actor_critic_forward.1} parent=1 // pred_region
      %55 = dma.done [#allocation5], 16
    $region21: #{actor_critic_forward.1} parent=1 // pred_fallthru
      _
    // Predicated region
    $region22: #{actor_critic_forward.1} parent=1 // pred_check
      _
    $region23: #{actor_critic_forward.1} parent=1 // pred_check_branch
      %57 = sbr.rel (0) target = $region25
    $region24: #{actor_critic_forward.1} parent=1 // pred_region
      %59 = dma.done [#allocation3], 7936
    $region25: #{actor_critic_forward.1} parent=1 // pred_fallthru
      _
    // Predicated region
    $region26: #{actor_critic_forward.1} parent=1 // pred_check
      _
    $region27: #{actor_critic_forward.1} parent=1 // pred_check_branch
      %61 = sbr.rel (0) target = $region29
    $region28: #{actor_critic_forward.1} parent=1 // pred_region
      %63 = dma.done [#allocation8], 128
    $region29: #{actor_critic_forward.1} parent=1 // pred_fallthru
      _
    %64 = sfence
    %v65 = vld [vmem:[%s2] sm:$0x1]
    %v66 = vld [vmem:[#allocation7] sm:$0xff]
    %v67 = vld [vmem:[#allocation6] sm:$0xff]
    %v68 = vld [vmem:[#allocation6 + $0x8] sm:$0xff]
    %v69 = vld [vmem:[#allocation6 + $0x10] sm:$0xff]
    %v70 = vld [vmem:[#allocation6 + $0x18] sm:$0xff]
    %v71 = vld [vmem:[#allocation6 + $0x20] sm:$0xff]
    %v72 = vld [vmem:[#allocation6 + $0x28] sm:$0xff]
    %v73 = vld [vmem:[#allocation6 + $0x30] sm:$0xff]
    %v74 = vld [vmem:[#allocation6 + $0x38] sm:$0xff]
    %v75 = vld [vmem:[#allocation6 + $0x40] sm:$0xff]
    %v76 = vld [vmem:[#allocation6 + $0x48] sm:$0xff]
    %v77 = vld [vmem:[#allocation6 + $0x50] sm:$0xff]
    %v78 = vld [vmem:[#allocation6 + $0x58] sm:$0xff]
    %v79 = vld [vmem:[#allocation6 + $0x60] sm:$0xff]
    %v80 = vld [vmem:[#allocation6 + $0x68] sm:$0xff]
    %v81 = vld [vmem:[#allocation6 + $0x70] sm:$0xff]
    %v82 = vld [vmem:[#allocation6 + $0x78] sm:$0xff]
    %v83 = vld [vmem:[#allocation6 + $0x80] sm:$0x1]
    %vm84 = vcmask 523264
    %v86 = vsel %vm84, %v65, 0
    %88 = vmatpush.msra.mxu0 0.0
    %89 = vmatpush.msra.mxu0 0.0
    %90 = vmatpush.msra.mxu0 0.0
    %91 = vmatpush.msra.mxu0 0.0
    %92 = vmatpush.msra.mxu0 0.0
    %93 = vmatpush.msra.mxu0 0.0
    %94 = vmatpush.msra.mxu0 0.0
    %95 = vmatpush.msra.mxu0 0.0
    %96 = vmatpush.msra.mxu0 %v74
    %97 = vmatpush.msra.mxu0 %v73
    %98 = vmatpush.msra.mxu0 %v72
    %99 = vmatpush.msra.mxu0 %v71
    %100 = vmatpush.msra.mxu0 %v70
    %101 = vmatpush.msra.mxu0 %v69
    %102 = vmatpush.msra.mxu0 %v68
    %103 = vmatpush.msra.mxu0 %v67
    %104 = vmatmul.f32.gmra.mxu0 %v86
    %v105 = vpop.f32.mrf.mxu0
    %v106 = vadd.f32 0.0, %v105
    %107 = vdwg.mxu0
    %v108 = vperm.slane %v106, 0
    %v110 = vsel %vm84, %v66, 0
    %112 = vmatpush.msra.mxu0 0.0
    %113 = vmatpush.msra.mxu0 0.0
    %114 = vmatpush.msra.mxu0 0.0
    %115 = vmatpush.msra.mxu0 0.0
    %116 = vmatpush.msra.mxu0 0.0
    %117 = vmatpush.msra.mxu0 0.0
    %118 = vmatpush.msra.mxu0 0.0
    %119 = vmatpush.msra.mxu0 0.0
    %120 = vmatpush.msra.mxu0 %v82
    %121 = vmatpush.msra.mxu0 %v81
    %122 = vmatpush.msra.mxu0 %v80
    %123 = vmatpush.msra.mxu0 %v79
    %124 = vmatpush.msra.mxu0 %v78
    %125 = vmatpush.msra.mxu0 %v77
    %126 = vmatpush.msra.mxu0 %v76
    %127 = vmatpush.msra.mxu0 %v75
    %128 = vmatmul.f32.gmra.mxu0 %v110
    %v129 = vpop.f32.mrf.mxu0
    %v130 = vadd.f32 %v108, %v129
    %131 = vdwg.mxu0
    %v132 = vperm.slane %v83, 0
    %v133 = vadd.f32 %v130, %v132
    %v134 = vmax.f32 %v133, 0.0
    %v135 = vld [vmem:[#allocation6 + $0x88] sm:$0xff]
    %v136 = vld [vmem:[#allocation6 + $0x90] sm:$0xff]
    %v137 = vld [vmem:[#allocation6 + $0x98] sm:$0xff]
    %v138 = vld [vmem:[#allocation6 + $0xa0] sm:$0xff]
    %v139 = vld [vmem:[#allocation6 + $0xa8] sm:$0xff]
    %v140 = vld [vmem:[#allocation6 + $0xb0] sm:$0xff]
    %v141 = vld [vmem:[#allocation6 + $0xb8] sm:$0xff]
    %v142 = vld [vmem:[#allocation6 + $0xc0] sm:$0xff]
    %v143 = vld [vmem:[#allocation6 + $0xc8] sm:$0xff]
    %v144 = vld [vmem:[#allocation6 + $0xd0] sm:$0xff]
    %v145 = vld [vmem:[#allocation6 + $0xd8] sm:$0xff]
    %v146 = vld [vmem:[#allocation6 + $0xe0] sm:$0xff]
    %v147 = vld [vmem:[#allocation6 + $0xe8] sm:$0xff]
    %v148 = vld [vmem:[#allocation6 + $0xf0] sm:$0xff]
    %v149 = vld [vmem:[#allocation6 + $0xf8] sm:$0xff]
    %v150 = vld [vmem:[#allocation6 + $0x100] sm:$0xff]
    %v151 = vld [vmem:[#allocation6 + $0x108] sm:$0x1]
    %v152 = vperm.slane %v151, 0
    %153 = vmatpush.msra.mxu0 %v150
    %154 = vmatpush.msra.mxu0 %v149
    %155 = vmatpush.msra.mxu0 %v148
    %156 = vmatpush.msra.mxu0 %v147
    %157 = vmatpush.msra.mxu0 %v146
    %158 = vmatpush.msra.mxu0 %v145
    %159 = vmatpush.msra.mxu0 %v144
    %160 = vmatpush.msra.mxu0 %v143
    %161 = vmatpush.msra.mxu0 %v142
    %162 = vmatpush.msra.mxu0 %v141
    %163 = vmatpush.msra.mxu0 %v140
    %164 = vmatpush.msra.mxu0 %v139
    %165 = vmatpush.msra.mxu0 %v138
    %166 = vmatpush.msra.mxu0 %v137
    %167 = vmatpush.msra.mxu0 %v136
    %168 = vmatpush.msra.mxu0 %v135
    %169 = vmatmul.f32.gmra.mxu0 %v134
    %v170 = vpop.f32.mrf.mxu0
    %v171 = vadd.f32 %v152, %v170
    %172 = vdwg.mxu0
    %v173 = vmax.f32 %v171, 0.0
    %v174 = vld [vmem:[#allocation6 + $0x110] sm:$0x1]
    %s175 = sld [smem:[#allocation2]]
    %v176 = vstv %s175
    %177 = vmatpush.xpose.msra.mxu0 0.0
    %178 = vmatpush.xpose.msra.mxu0 0.0
    %179 = vmatpush.xpose.msra.mxu0 0.0
    %180 = vmatpush.xpose.msra.mxu0 0.0
    %181 = vmatpush.xpose.msra.mxu0 0.0
    %182 = vmatpush.xpose.msra.mxu0 0.0
    %183 = vmatpush.xpose.msra.mxu0 0.0
    %184 = vmatpush.xpose.msra.mxu0 0.0
    %185 = vmatpush.xpose.msra.mxu0 0.0
    %186 = vmatpush.xpose.msra.mxu0 0.0
    %187 = vmatpush.xpose.msra.mxu0 0.0
    %188 = vmatpush.xpose.msra.mxu0 0.0
    %189 = vmatpush.xpose.msra.mxu0 0.0
    %190 = vmatpush.xpose.msra.mxu0 0.0
    %191 = vmatpush.xpose.msra.mxu0 0.0
    %192 = vmatpush.xpose.msra.mxu0 %v173
    %193 = vmatmul.f32.gmra.mxu0 %v174
    %v194 = vpop.f32.mrf.mxu0
    %v195 = vadd.f32 %v176, %v194
    %196 = vdwg.mxu0
    %vm197 = vcmask 57344
    %198 = vst.msk [vmem:[#allocation10] sm:$0x1] %vm197, %v195
    %v199 = vsel %vm197, %v195, -inf
    %200 = vmax.xlane.f32.xlu0 %v199
    %v201 = vpop.xlane.xlu0 %200
    %v202 = vsub.f32 %v195, %v201
    %v203 = vmul.f32 %v202, 1.442695
    %v204 = vpow.pop %v203
    %v205 = vsel %vm197, %v204, 0.0
    %206 = vadd.xlane.f32.xlu0 %v205
    %v207 = vpop.xlane.xlu0 %206
    %v208 = vrcp.pop %v207
    %v209 = vmul.f32 %v204, %v208
    %210 = vst.msk [vmem:[#allocation9] sm:$0x1] %vm197, %v209
    %v211 = vld [vmem:[#allocation6 + $0x118] sm:$0xff]
    %v212 = vld [vmem:[#allocation6 + $0x120] sm:$0xff]
    %v213 = vld [vmem:[#allocation6 + $0x128] sm:$0xff]
    %v214 = vld [vmem:[#allocation6 + $0x130] sm:$0xff]
    %v215 = vld [vmem:[#allocation6 + $0x138] sm:$0xff]
    %v216 = vld [vmem:[#allocation6 + $0x140] sm:$0xff]
    %v217 = vld [vmem:[#allocation6 + $0x148] sm:$0xff]
    %v218 = vld [vmem:[#allocation6 + $0x150] sm:$0xff]
    %v219 = vld [vmem:[#allocation6 + $0x1d8] sm:$0x1]
    %v220 = vld [vmem:[#allocation6 + $0x158] sm:$0xff]
    %v221 = vld [vmem:[#allocation6 + $0x160] sm:$0xff]
    %v222 = vld [vmem:[#allocation6 + $0x168] sm:$0xff]
    %v223 = vld [vmem:[#allocation6 + $0x170] sm:$0xff]
    %v224 = vld [vmem:[#allocation6 + $0x178] sm:$0xff]
    %v225 = vld [vmem:[#allocation6 + $0x180] sm:$0xff]
    %v226 = vld [vmem:[#allocation6 + $0x188] sm:$0xff]
    %v227 = vld [vmem:[#allocation6 + $0x190] sm:$0xff]
    %v228 = vld [vmem:[#allocation6 + $0x198] sm:$0xff]
    %v229 = vld [vmem:[#allocation6 + $0x1a0] sm:$0xff]
    %v230 = vld [vmem:[#allocation6 + $0x1a8] sm:$0xff]
    %v231 = vld [vmem:[#allocation6 + $0x1b0] sm:$0xff]
    %v232 = vld [vmem:[#allocation6 + $0x1b8] sm:$0xff]
    %v233 = vld [vmem:[#allocation6 + $0x1c0] sm:$0xff]
    %v234 = vld [vmem:[#allocation6 + $0x1c8] sm:$0xff]
    %v235 = vld [vmem:[#allocation6 + $0x1d0] sm:$0xff]
    %v236 = vld [vmem:[#allocation6 + $0x1e0] sm:$0x1]
    %v237 = vld [vmem:[#allocation6 + $0x1e8] sm:$0x1]
    %s238 = sld [smem:[#allocation2 + $0x1]]
    %239 = vmatpush.msra.mxu0 0.0
    %240 = vmatpush.msra.mxu0 0.0
    %241 = vmatpush.msra.mxu0 0.0
    %242 = vmatpush.msra.mxu0 0.0
    %243 = vmatpush.msra.mxu0 0.0
    %244 = vmatpush.msra.mxu0 0.0
    %245 = vmatpush.msra.mxu0 0.0
    %246 = vmatpush.msra.mxu0 0.0
    %247 = vmatpush.msra.mxu0 %v218
    %248 = vmatpush.msra.mxu0 %v217
    %249 = vmatpush.msra.mxu0 %v216
    %250 = vmatpush.msra.mxu0 %v215
    %251 = vmatpush.msra.mxu0 %v214
    %252 = vmatpush.msra.mxu0 %v213
    %253 = vmatpush.msra.mxu0 %v212
    %254 = vmatpush.msra.mxu0 %v211
    %255 = vmatmul.f32.gmra.mxu0 %v86
    %v256 = vpop.f32.mrf.mxu0
    %v257 = vadd.f32 %v219, %v256
    %258 = vdwg.mxu0
    %v259 = vtanh.pop %v257
    %260 = vmatpush.msra.mxu0 %v235
    %261 = vmatpush.msra.mxu0 %v234
    %262 = vmatpush.msra.mxu0 %v233
    %263 = vmatpush.msra.mxu0 %v232
    %264 = vmatpush.msra.mxu0 %v231
    %265 = vmatpush.msra.mxu0 %v230
    %266 = vmatpush.msra.mxu0 %v229
    %267 = vmatpush.msra.mxu0 %v228
    %268 = vmatpush.msra.mxu0 %v227
    %269 = vmatpush.msra.mxu0 %v226
    %270 = vmatpush.msra.mxu0 %v225
    %271 = vmatpush.msra.mxu0 %v224
    %272 = vmatpush.msra.mxu0 %v223
    %273 = vmatpush.msra.mxu0 %v222
    %274 = vmatpush.msra.mxu0 %v221
    %275 = vmatpush.msra.mxu0 %v220
    %276 = vmatmul.f32.gmra.mxu0 %v259
    %v277 = vpop.f32.mrf.mxu0
    %v278 = vadd.f32 %v236, %v277
    %279 = vdwg.mxu0
    %v280 = vtanh.pop %v278
    %v281 = vmul.f32 %v280, %v237
    %vm282 = vcmask 1040384
    %v283 = vsel %vm282, %v281, 0.0
    %284 = vadd.xlane.f32.xlu0 %v283
    %v285 = vpop.xlane.xlu0 %284
    %v286 = vstv %s238
    %v287 = vadd.f32 %v285, %v286
    %vm288 = vcmask 0
    %289 = vst.msk [vmem:[#allocation12] sm:$0x1] %vm288, %v287
    // Predicated region
    $region30: #{actor_critic_forward.1} parent=1 // pred_check
      _
    $region31: #{actor_critic_forward.1} parent=1 // pred_check_branch
      %291 = sbr.rel (0) target = $region33
    $region32: #{actor_critic_forward.1} parent=1 // pred_region
      %293 = vsyncadd [#allocation4], 0
      %s295 = sshll.u32 [#allocation9], 4
      %s296 = int_to_ptr.vmem [resolvable:$true] %s295
      %s297 = sshll.u32 %s4, 4
      %s298 = int_to_ptr.hbm [resolvable:$true] %s297
      %300 = dma.vmem_to_hbm [thread:$0]  %s296, 16, %s298, [#allocation4]
    $region33: #{actor_critic_forward.1} parent=1 // pred_fallthru
      _
    // Predicated region
    $region34: #{actor_critic_forward.1} parent=1 // pred_check
      _
    $region35: #{actor_critic_forward.1} parent=1 // pred_check_branch
      %302 = sbr.rel (0) target = $region37
    $region36: #{actor_critic_forward.1} parent=1 // pred_region
      %304 = vsyncadd [#allocation11], 0
      %s306 = sshll.u32 [#allocation10], 4
      %s307 = int_to_ptr.vmem [resolvable:$true] %s306
      %s308 = sshll.u32 %s5, 4
      %s309 = int_to_ptr.hbm [resolvable:$true] %s308
      %311 = dma.vmem_to_hbm [thread:$0]  %s307, 16, %s309, [#allocation11]
    $region37: #{actor_critic_forward.1} parent=1 // pred_fallthru
      _
    // Predicated region
    $region38: #{actor_critic_forward.1} parent=1 // pred_check
      _
    $region39: #{actor_critic_forward.1} parent=1 // pred_check_branch
      %313 = sbr.rel (0) target = $region41
    $region40: #{actor_critic_forward.1} parent=1 // pred_region
      %315 = vsyncadd [#allocation11], 0
      %s317 = sshll.u32 [#allocation12], 4
      %s318 = int_to_ptr.vmem [resolvable:$true] %s317
      %s319 = sshll.u32 %s6, 4
      %s320 = int_to_ptr.hbm [resolvable:$true] %s319
      %322 = dma.vmem_to_hbm [thread:$0]  %s318, 16, %s320, [#allocation11]
    $region41: #{actor_critic_forward.1} parent=1 // pred_fallthru
      _
    // Predicated region
    $region42: #{actor_critic_forward.1} parent=1 // pred_check
      _
    $region43: #{actor_critic_forward.1} parent=1 // pred_check_branch
      %324 = sbr.rel (0) target = $region45
    $region44: #{actor_critic_forward.1} parent=1 // pred_region
      %326 = dma.done [#allocation4], 16
    $region45: #{actor_critic_forward.1} parent=1 // pred_fallthru
      _
    // Predicated region
    $region46: #{actor_critic_forward.1} parent=1 // pred_check
      _
    $region47: #{actor_critic_forward.1} parent=1 // pred_check_branch
      %328 = sbr.rel (0) target = $region49
    $region48: #{actor_critic_forward.1} parent=1 // pred_region
      %330 = dma.done [#allocation11], 16
    $region49: #{actor_critic_forward.1} parent=1 // pred_fallthru
      _
    // Predicated region
    $region50: #{actor_critic_forward.1} parent=1 // pred_check
      _
    $region51: #{actor_critic_forward.1} parent=1 // pred_check_branch
      %332 = sbr.rel (0) target = $region53
    $region52: #{actor_critic_forward.1} parent=1 // pred_region
      %334 = dma.done [#allocation11], 16
    $region53: #{actor_critic_forward.1} parent=1 // pred_fallthru
      _
    %335 = vsyncpa [#allocation3], 1
    %336 = vsyncpa [#allocation8], 1
    %337 = vsyncpa [#allocation4], 1
    %338 = vsyncpa [#allocation11], 1
    %339 = vsyncpa [#allocation5], 1

</llo_original>
